<compile_context>
chip_gen: v6e
topology: v6e:2x2x1
jax: 0.10.0
libtpu: 0.0.40
codegen_flags: <defaults>
</compile_context>

<pallas_src>
import jax
import jax.numpy as jnp
from jax.experimental import pallas as pl
from jax.experimental.pallas import tpu as pltpu


ALPHA = 1.0
GAMMA = 3          # fixed in the module; cube is unrolled below
LANES = 128
MAX_TILE_ROWS = 2048   # 2048x128 f32 block => 1 MiB; x6 (2 in + 1 out, double-buffered) ~= 6 MiB


def _cmfl_kernel(pm_ref, pn_ref, out_ref):
    # load in original dtype, compute in f32 registers
    pm = pm_ref[...].astype(jnp.float32)
    pn = pn_ref[...].astype(jnp.float32)

    inv = pl.reciprocal(pm + pn, approx=False)   # keep exact for 1e-5 tolerance
    # w = prob_n * 2 * prob_m * prob_n / (prob_m + prob_n)
    w = (2.0 * pm) * (pn * pn) * inv
    omw = 1.0 - w
    pow_g = (omw * omw) * omw                    # (1 - w) ** 3
    res = -ALPHA * pow_g * jnp.log(pm)

    out_ref[...] = res.astype(out_ref.dtype)


def cross_modal_focal_loss(prob_m: jax.Array, prob_n: jax.Array) -> jax.Array:
    assert prob_m.shape == prob_n.shape
    orig_shape = prob_m.shape
    orig_dtype = prob_m.dtype

    flat = prob_m.size
    rows = -(-flat // LANES)                     # ceil-div to full 128-lane rows

    # Pick the row tile: one block for small inputs, capped at MAX_TILE_ROWS
    # (multiple of 8 sublanes) for large ones.
    if rows <= MAX_TILE_ROWS:
        tile_r = ((rows + 7) // 8) * 8           # whole slab in one grid step
    else:
        tile_r = MAX_TILE_ROWS
    rows_padded = ((rows + tile_r - 1) // tile_r) * tile_r
    padded_flat = rows_padded * LANES

    pm_flat = prob_m.reshape(-1)
    pn_flat = prob_n.reshape(-1)
    if padded_flat != flat:
        # pad value 1.0 keeps log() and the division finite in the dead region
        pad = padded_flat - flat
        pm_flat = jnp.pad(pm_flat, (0, pad), constant_values=1.0)
        pn_flat = jnp.pad(pn_flat, (0, pad), constant_values=1.0)

    pm2d = pm_flat.reshape(rows_padded, LANES)   # lane-dense slab, no dtype cast
    pn2d = pn_flat.reshape(rows_padded, LANES)

    grid = (rows_padded // tile_r,)

    out2d = pl.pallas_call(
        _cmfl_kernel,
        out_shape=jax.ShapeDtypeStruct((rows_padded, LANES), orig_dtype),
        grid_spec=pltpu.PrefetchScalarGridSpec(
            num_scalar_prefetch=0,
            grid=grid,
            in_specs=[
                pl.BlockSpec((tile_r, LANES), lambda i: (i, 0)),
                pl.BlockSpec((tile_r, LANES), lambda i: (i, 0)),
            ],
            out_specs=pl.BlockSpec((tile_r, LANES), lambda i: (i, 0)),
        ),
        compiler_params=pltpu.CompilerParams(
            dimension_semantics=("parallel",),   # lets v7x shard steps across 2 TCs
        ),
    )(pm2d, pn2d)

    out_flat = out2d.reshape(-1)
    if padded_flat != flat:
        out_flat = out_flat[:flat]
    return out_flat.reshape(orig_shape)


def _reference(prob_m, prob_n, alpha=ALPHA, gamma=GAMMA):
    w = prob_n * 2 * prob_m * prob_n / (prob_m + prob_n)
    return -alpha * (1 - w) ** gamma * jnp.log(prob_m)


if __name__ == "__main__":
    key = jax.random.PRNGKey(0)
    k1, k2 = jax.random.split(key)
    shape = (2, 4, 16, 16)  # batch=2, channels=4, spatial=16x16 probabilities
    # probabilities of the true class, kept in (eps, 1) so log() is finite
    prob_m = jax.random.uniform(k1, shape, jnp.float32, minval=1e-3, maxval=1.0)
    prob_n = jax.random.uniform(k2, shape, jnp.float32, minval=1e-3, maxval=1.0)

    out = cross_modal_focal_loss(prob_m, prob_n)
    out = jax.block_until_ready(out)

    ref = _reference(prob_m, prob_n)
    assert out.shape == shape
    assert out.dtype == prob_m.dtype
    assert jnp.allclose(out, ref, rtol=1e-5, atol=1e-5), "mismatch vs reference"
    print("KERNEL_OK")
</pallas_src>

<mosaic_0001>
module attributes {stable_mosaic.version = 11 : i64} {
  func.func @_cmfl_kernel(%arg0: i32, %arg1: memref<16x128xf32, #tpu.memory_space<vmem>>, %arg2: memref<16x128xf32, #tpu.memory_space<vmem>>, %arg3: memref<16x128xf32, #tpu.memory_space<vmem>>) attributes {dimension_semantics = [#tpu.dimension_semantics<parallel>], iteration_bounds = array<i64: 1>, scalar_prefetch = 0 : i64, scratch_operands = 0 : i64, tpu.core_type = #tpu.core_type<tc>, window_params = [{transform_indices = @transform_0, window_bounds = array<i64: 16, 128>}, {transform_indices = @transform_1, window_bounds = array<i64: 16, 128>}, {transform_indices = @transform_2, window_bounds = array<i64: 16, 128>}]} {
    %c0 = arith.constant 0 : index
    %c0_0 = arith.constant 0 : index
    %0 = vector.load %arg1[%c0, %c0_0] : memref<16x128xf32, #tpu.memory_space<vmem>>, vector<16x128xf32>
    %c0_1 = arith.constant 0 : index
    %c0_2 = arith.constant 0 : index
    %1 = vector.load %arg2[%c0_1, %c0_2] : memref<16x128xf32, #tpu.memory_space<vmem>>, vector<16x128xf32>
    %2 = arith.addf %0, %1 : vector<16x128xf32>
    %3 = tpu.reciprocal %2 : vector<16x128xf32> -> vector<16x128xf32>
    %cst = arith.constant 2.000000e+00 : f32
    %4 = vector.broadcast %cst : f32 to vector<16x128xf32>
    %5 = arith.mulf %4, %0 : vector<16x128xf32>
    %6 = arith.mulf %1, %1 : vector<16x128xf32>
    %7 = arith.mulf %5, %6 : vector<16x128xf32>
    %8 = arith.mulf %7, %3 : vector<16x128xf32>
    %cst_3 = arith.constant 1.000000e+00 : f32
    %9 = vector.broadcast %cst_3 : f32 to vector<16x128xf32>
    %10 = arith.subf %9, %8 : vector<16x128xf32>
    %11 = arith.mulf %10, %10 : vector<16x128xf32>
    %12 = arith.mulf %11, %10 : vector<16x128xf32>
    %cst_4 = arith.constant -1.000000e+00 : f32
    %13 = vector.broadcast %cst_4 : f32 to vector<16x128xf32>
    %14 = arith.mulf %13, %12 : vector<16x128xf32>
    %15 = math.log %0 : vector<16x128xf32>
    %16 = arith.mulf %14, %15 : vector<16x128xf32>
    %c0_5 = arith.constant 0 : index
    %c0_6 = arith.constant 0 : index
    %17 = vector.load %arg3[%c0_5, %c0_6] : memref<16x128xf32, #tpu.memory_space<vmem>>, vector<16x128xf32>
    tpu.vector_store %arg3[%c0_5, %c0_6], %16 {strides = array<i32>} : memref<16x128xf32, #tpu.memory_space<vmem>>, vector<16x128xf32>,
    return
  }
  func.func @transform_0(%arg0: i32) -> (i32, i32) {
    %c0_i32 = arith.constant 0 : i32
    %c0_i32_0 = arith.constant 0 : i32
    return %arg0, %c0_i32 : i32, i32
  }
  func.func @transform_1(%arg0: i32) -> (i32, i32) {
    %c0_i32 = arith.constant 0 : i32
    %c0_i32_0 = arith.constant 0 : i32
    return %arg0, %c0_i32 : i32, i32
  }
  func.func @transform_2(%arg0: i32) -> (i32, i32) {
    %c0_i32 = arith.constant 0 : i32
    %c0_i32_0 = arith.constant 0 : i32
    return %arg0, %c0_i32 : i32, i32
  }
}

</mosaic_0001>

<llo_original>
// kernel: tpu_custom_call.1
$region0: #{tpu_custom_call.1}
  #allocation0 [shape = 'u32[]', space=smem, size = 0x4, offset = 0x4, fixed_abs, tag = 'smem constant byte address 0x4 - core index']
  #allocation1 [shape = 'u32[144,128]{1,0:T(1,128)}', space=vmem, size = 0x12000, scoped, tag = 'internal scratch']
  %s0 = inlined_call_operand.hbm [shape: f32[16,128], index: 0, kind: input, shape index: {}]
  %s1 = inlined_call_operand.hbm [shape: f32[16,128], index: 1, kind: input, shape index: {}]
  %s2 = inlined_call_operand.hbm [shape: f32[16,128], index: 2, kind: output, shape index: {}]
  %s3 = sld [smem:[#allocation0]]
  $region26: #{tpu_custom_call.1} parent=0
    _
  %s5 = ssub.s32 1, %s3
  %s6 = scalar_select 0, %s5, %s3
  $region1: #{tpu_custom_call.1} parent=0
    #allocation2 [shape = 'u8[8192]{0}', space=vmem, size = 0x2000, scoped, tag = 'input window, operand 0, single buffered']
    #allocation3 [shape = 's32[1]{0}', space=sflag, size = 0x4, scoped, tag = 'scoped memory for tpu_custom_call.1']
    #allocation4 [shape = 's32[1]{0}', space=sflag, size = 0x4, scoped, tag = 'scoped memory for tpu_custom_call.1']
    #allocation5 [shape = 'u8[8192]{0}', space=vmem, size = 0x2000, scoped, tag = 'input window, operand 1, single buffered']
    #allocation6 [shape = 's32[1]{0}', space=sflag, size = 0x4, scoped, tag = 'scoped memory for tpu_custom_call.1']
    #allocation7 [shape = 'u8[8192]{0}', space=vmem, size = 0x2000, scoped, tag = 'output window, operand 0, single buffered']
    %7 = vsyncpa [#allocation3], 0
    %8 = vsyncpa [#allocation6], 0
    %9 = vsyncpa [#allocation4], 0
    // Predicated region
    $region2: #{tpu_custom_call.1} parent=1 // pred_check
      _
    $region3: #{tpu_custom_call.1} parent=1 // pred_check_branch
      %11 = sbr.rel (0) target = $region5
    $region4: #{tpu_custom_call.1} parent=1 // pred_region
      %s13 = ssub.s32 256, 256
      %14 = vsyncadd [#allocation3], %s13
      %s15 = sshll.u32 [#allocation2], 4
      %s16 = int_to_ptr.vmem [resolvable:$true] %s15
      %21 = dma.hbm_to_vmem [thread:$0]  %s0, 256, %s16, [#allocation3], 128, 128, 8
    $region5: #{tpu_custom_call.1} parent=1 // pred_fallthru
      _
    // Predicated region
    $region6: #{tpu_custom_call.1} parent=1 // pred_check
      _
    $region7: #{tpu_custom_call.1} parent=1 // pred_check_branch
      %23 = sbr.rel (0) target = $region9
    $region8: #{tpu_custom_call.1} parent=1 // pred_region
      %s25 = ssub.s32 256, 256
      %26 = vsyncadd [#allocation6], %s25
      %s27 = sshll.u32 [#allocation5], 4
      %s28 = int_to_ptr.vmem [resolvable:$true] %s27
      %33 = dma.hbm_to_vmem [thread:$0]  %s1, 256, %s28, [#allocation6], 128, 128, 8
    $region9: #{tpu_custom_call.1} parent=1 // pred_fallthru
      _
    // Predicated region
    $region10: #{tpu_custom_call.1} parent=1 // pred_check
      _
    $region11: #{tpu_custom_call.1} parent=1 // pred_check_branch
      %35 = sbr.rel (0) target = $region13
    $region12: #{tpu_custom_call.1} parent=1 // pred_region
      %36 = dma.done [#allocation3], 256
    $region13: #{tpu_custom_call.1} parent=1 // pred_fallthru
      _
    // Predicated region
    $region14: #{tpu_custom_call.1} parent=1 // pred_check
      _
    $region15: #{tpu_custom_call.1} parent=1 // pred_check_branch
      %38 = sbr.rel (0) target = $region17
    $region16: #{tpu_custom_call.1} parent=1 // pred_region
      %39 = dma.done [#allocation6], 256
    $region17: #{tpu_custom_call.1} parent=1 // pred_fallthru
      _
    %v40 = vld [vmem:[#allocation2] sm:$0xff]
    %v41 = vld [vmem:[#allocation2 + $0x8] sm:$0xff]
    %v42 = vld [vmem:[#allocation5] sm:$0xff]
    %v43 = vld [vmem:[#allocation5 + $0x8] sm:$0xff]
    %v44 = vadd.f32 %v40, %v42
    %v45 = vadd.f32 %v41, %v43
    %v46 = vrcp.pop %v44
    %v47 = vrcp.pop %v45
    %v48 = vmul.f32 %v40, 2.0
    %v49 = vmul.f32 %v41, 2.0
    %v50 = vmul.f32 %v42, %v42
    %v51 = vmul.f32 %v43, %v43
    %v52 = vmul.f32 %v48, %v50
    %v53 = vmul.f32 %v49, %v51
    %v54 = vmul.f32 %v52, %v46
    %v55 = vmul.f32 %v53, %v47
    %v56 = vsub.f32 1.0, %v54
    %v57 = vsub.f32 1.0, %v55
    %v58 = vmul.f32 %v56, %v56
    %v59 = vmul.f32 %v57, %v57
    %v60 = vmul.f32 %v58, %v56
    %v61 = vmul.f32 %v59, %v57
    %v62 = vmul.f32 %v60, -1.0
    %v63 = vmul.f32 %v61, -1.0
    %v64 = vlog2.pop %v40
    %v65 = vmul.f32 %v64, 0.6931472
    %v66 = vlog2.pop %v41
    %v67 = vmul.f32 %v66, 0.6931472
    %v68 = vmul.f32 %v62, %v65
    %v69 = vmul.f32 %v63, %v67
    %70 = vst [vmem:[#allocation7] sm:$0xff] %v68
    %71 = vst [vmem:[#allocation7 + $0x8] sm:$0xff] %v69
    // Predicated region
    $region18: #{tpu_custom_call.1} parent=1 // pred_check
      _
    $region19: #{tpu_custom_call.1} parent=1 // pred_check_branch
      %73 = sbr.rel (0) target = $region21
    $region20: #{tpu_custom_call.1} parent=1 // pred_region
      %s75 = ssub.s32 256, 256
      %76 = vsyncadd [#allocation4], %s75
      %s77 = sshll.u32 [#allocation7], 4
      %s78 = int_to_ptr.vmem [resolvable:$true] %s77
      %83 = dma.vmem_to_hbm [thread:$0]  %s78, 256, %s2, [#allocation4], 128, 128, 8
    $region21: #{tpu_custom_call.1} parent=1 // pred_fallthru
      _
    // Predicated region
    $region22: #{tpu_custom_call.1} parent=1 // pred_check
      _
    $region23: #{tpu_custom_call.1} parent=1 // pred_check_branch
      %85 = sbr.rel (0) target = $region25
    $region24: #{tpu_custom_call.1} parent=1 // pred_region
      %86 = dma.done [#allocation4], 256
    $region25: #{tpu_custom_call.1} parent=1 // pred_fallthru
      _
    %87 = vsyncpa [#allocation3], 1
    %88 = vsyncpa [#allocation6], 1
    %89 = vsyncpa [#allocation4], 1

</llo_original>
